<compile_context>
chip_gen: v7x
topology: tpu7x:2x2x1
jax: 0.10.0
libtpu: 0.0.40
codegen_flags: <defaults>
</compile_context>

<pallas_src>
import functools
import math

import jax
import jax.numpy as jnp
from jax.experimental import pallas as pl
from jax.experimental.pallas import tpu as pltpu


# ---------------------------------------------------------------------------
# Kernels
# ---------------------------------------------------------------------------

def _fused_kernel(x_ref, w1_ref, b1_ref, w2_ref, o_ref, *, compute_dtype,
                  approx_recip):
    """Whole-sequence fused path: one batch block per grid step."""
    bblk, s, d = x_ref.shape
    x = x_ref[...]                                    # [Bblk, S, D]
    x2d = x.reshape(bblk * s, d)                      # collapse batch into rows

    # First linear + tanh: MXU matmul in compute_dtype (bf16 fast path) with
    # f32 accumulation; tanh runs on the EUP slot.
    h = jnp.tanh(
        jnp.dot(x2d.astype(compute_dtype), w1_ref[...],
                preferred_element_type=jnp.float32)
        + b1_ref[...])                                # [Bblk*S, H] f32

    # Second linear has output width 1 -> VPU multiply + XLU lane reduce
    # instead of a 1/128-lane MXU matmul.
    scores = jnp.sum(h * w2_ref[...], axis=-1, keepdims=True)   # [Bblk*S, 1]
    scores = scores.reshape(bblk, s, 1)

    # Softmax over the sequence axis, independently per batch element.
    m = jnp.max(scores, axis=1, keepdims=True)
    e = jnp.exp(scores - m)
    denom = jnp.sum(e, axis=1, keepdims=True)
    attn = e * pl.reciprocal(denom, approx=approx_recip)

    # Pointwise product in x's native dtype (no f32 round-trip of the block).
    o_ref[...] = (x * attn.astype(x.dtype)).astype(o_ref.dtype)


def _scores_kernel(x_ref, w1_ref, b1_ref, w2_ref, s_ref, *, compute_dtype):
    """S-tiled fallback, pass 1: raw attention scores for one sequence tile."""
    _, ts, d = x_ref.shape
    x2d = x_ref[...].reshape(ts, d)
    h = jnp.tanh(
        jnp.dot(x2d.astype(compute_dtype), w1_ref[...],
                preferred_element_type=jnp.float32)
        + b1_ref[...])                                # [ts, H] f32
    s = jnp.sum(h * w2_ref[...], axis=-1, keepdims=True)        # [ts, 1]
    s_ref[...] = s.reshape(1, ts, 1)


def _scale_kernel(x_ref, a_ref, o_ref):
    """S-tiled fallback, pass 2: out = x * attn (attn broadcast over D)."""
    x = x_ref[...]
    o_ref[...] = (x * a_ref[...].astype(x.dtype)).astype(o_ref.dtype)


# ---------------------------------------------------------------------------
# Sizing helpers
# ---------------------------------------------------------------------------

def _tpu_vmem_and_tc():
    """Return (per-core VMEM bytes, # TensorCores sharing the grid)."""
    vmem_cap = None
    try:
        info = pltpu.get_tpu_info()
        cap = int(getattr(info, "vmem_capacity_bytes", 0) or 0)
        if cap > 0:
            vmem_cap = cap
    except Exception:
        pass
    if vmem_cap is None:
        vmem_cap = 64 << 20            # conservative default (v7x per-TC VMEM)
    # v7x exposes ~64 MiB/TC and has 2 TensorCores per chip; v5e/v6e have
    # 128 MiB and a single TC.
    num_tc = 2 if vmem_cap <= (64 << 20) else 1
    return vmem_cap, num_tc


def _step_vmem_bytes(rows, d, h_dim, x_itemsize, c_itemsize, needs_cast):
    """Approximate per-grid-step VMEM footprint for `rows` rows of x
    (rows = Bblk*S on the fused path, or the sequence tile on the fallback)."""
    io = 4 * rows * d * x_itemsize              # double-buffered in + out blocks
    hid = rows * h_dim * 4                      # f32 hidden activations
    cast = rows * d * c_itemsize if needs_cast else 0   # compute-dtype x copy
    wgt = 2 * (d * h_dim * c_itemsize + 4 * h_dim * 4)  # dbl-buffered weights
    small = rows * 64                           # scores / exp / attn temporaries
    return io + hid + cast + wgt + small


def _pick_block_b(batch, fits, num_tc):
    """Largest divisor of `batch` whose per-step footprint fits; on dual-TC
    parts prefer an even number of grid steps so both cores get equal work."""
    divisors = [b for b in range(1, batch + 1) if batch % b == 0]
    fitting = [b for b in divisors if fits(b)]
    if not fitting:
        return None
    best = max(fitting)
    if num_tc >= 2:
        even = [b for b in fitting if (batch // b) % 2 == 0]
        if even:
            best = max(even)
    return best


# ---------------------------------------------------------------------------
# Wrappers
# ---------------------------------------------------------------------------

def _additive_attention_s_tiled(x, w1_c, b1_r, w2_row, *, compute_dtype,
                                seq_block, budget, vmem_cap):
    """Two-pass fallback for large S*D: (1) scores per sequence tile,
    (2) softmax over the tiny [B, S, 1] score array, (3) scale x per tile."""
    B, S, D = x.shape
    H = w1_c.shape[1]
    x_itemsize = jnp.dtype(x.dtype).itemsize
    c_itemsize = jnp.dtype(compute_dtype).itemsize
    needs_cast = jnp.dtype(x.dtype) != jnp.dtype(compute_dtype)

    if seq_block is None:
        cands = [t for t in range(1, S + 1)
                 if S % t == 0 and (t % 8 == 0 or t == S)]
        fitting = [t for t in cands
                   if _step_vmem_bytes(t, D, H, x_itemsize, c_itemsize,
                                       needs_cast) <= budget]
        seq_block = max(fitting) if fitting else min(cands)  # best effort
    assert S % seq_block == 0, "seq_block must divide the sequence length"
    grid = (B, S // seq_block)

    need = _step_vmem_bytes(seq_block, D, H, x_itemsize, c_itemsize, needs_cast)
    vmem_limit = int(min(max(need + (4 << 20), 16 << 20), int(0.92 * vmem_cap)))
    params = pltpu.CompilerParams(
        dimension_semantics=("parallel", "arbitrary"),
        vmem_limit_bytes=vmem_limit)

    # Pass 1: per-tile scores.
    scores = pl.pallas_call(
        functools.partial(_scores_kernel, compute_dtype=compute_dtype),
        out_shape=jax.ShapeDtypeStruct((B, S, 1), jnp.float32),
        grid_spec=pltpu.PrefetchScalarGridSpec(
            num_scalar_prefetch=0,
            grid=grid,
            in_specs=[
                pl.BlockSpec((1, seq_block, D), lambda b, s: (b, s, 0)),
                pl.BlockSpec((D, H), lambda b, s: (0, 0)),
                pl.BlockSpec((1, H), lambda b, s: (0, 0)),
                pl.BlockSpec((1, H), lambda b, s: (0, 0)),
            ],
            out_specs=pl.BlockSpec((1, seq_block, 1), lambda b, s: (b, s, 0)),
        ),
        compiler_params=params,
    )(x, w1_c, b1_r, w2_row)

    # Softmax over the sequence axis on the tiny [B, S, 1] score array.
    attn = jax.nn.softmax(scores, axis=1)

    # Pass 2: scale x by the attention weights, tile by tile.
    return pl.pallas_call(
        _scale_kernel,
        out_shape=jax.ShapeDtypeStruct((B, S, D), x.dtype),
        grid_spec=pltpu.PrefetchScalarGridSpec(
            num_scalar_prefetch=0,
            grid=grid,
            in_specs=[
                pl.BlockSpec((1, seq_block, D), lambda b, s: (b, s, 0)),
                pl.BlockSpec((1, seq_block, 1), lambda b, s: (b, s, 0)),
            ],
            out_specs=pl.BlockSpec((1, seq_block, D), lambda b, s: (b, s, 0)),
        ),
        compiler_params=params,
    )(x, attn)


def additive_attention(x, w1, b1, w2, *, block_b=None, use_bf16=True,
                       force_s_tiled=False, seq_block=None,
                       vmem_budget_bytes=None, num_tensorcores=None):
    """x: [B, S, D]; w1: [D, H]; b1: [1, H] (or [H]); w2: [H, 1] -> [B, S, D].

    Output dtype follows x: pass bf16 x (with S % 16 == 0) to halve HBM
    traffic on this HBM-bound op.  For best performance D and H should be
    multiples of 128 (256 if compute-bound on v6e/v7x) and S a multiple of 8
    (16 for bf16 x) so the (Bblk,S,D)->(Bblk*S,D) reshape stays layout-free.
    Note: with use_bf16=True the softmax denominator uses the EUP approximate
    reciprocal, so attention weights sum to 1 only approximately.
    """
    B, S, D = x.shape
    H = w1.shape[1]
    compute_dtype = jnp.bfloat16 if use_bf16 else jnp.float32

    # Pre-cast weights once in the wrapper (no per-step casts in the kernel).
    w1_c = w1.astype(compute_dtype)
    b1_r = jnp.reshape(b1, (1, H)).astype(jnp.float32)
    w2_row = jnp.reshape(w2, (1, H)).astype(jnp.float32)

    vmem_cap, detected_tc = _tpu_vmem_and_tc()
    num_tc = num_tensorcores if num_tensorcores is not None else detected_tc
    budget = (vmem_budget_bytes if vmem_budget_bytes is not None
              else int(0.60 * vmem_cap))

    x_itemsize = jnp.dtype(x.dtype).itemsize
    c_itemsize = jnp.dtype(compute_dtype).itemsize
    needs_cast = jnp.dtype(x.dtype) != jnp.dtype(compute_dtype)

    def step_bytes_for_bb(bb):
        return _step_vmem_bytes(bb * S, D, H, x_itemsize, c_itemsize,
                                needs_cast)

    if block_b is None and not force_s_tiled:
        block_b = _pick_block_b(B, lambda bb: step_bytes_for_bb(bb) <= budget,
                                num_tc)

    if force_s_tiled or block_b is None:
        # Even one batch element at full S does not fit: tile the sequence.
        return _additive_attention_s_tiled(
            x, w1_c, b1_r, w2_row, compute_dtype=compute_dtype,
            seq_block=seq_block, budget=budget, vmem_cap=vmem_cap)

    assert B % block_b == 0, "block_b must divide the batch size"
    grid = (B // block_b,)
    need = step_bytes_for_bb(block_b)
    vmem_limit = int(min(max(need + (4 << 20), 16 << 20), int(0.92 * vmem_cap)))

    kernel = functools.partial(_fused_kernel, compute_dtype=compute_dtype,
                               approx_recip=use_bf16)
    return pl.pallas_call(
        kernel,
        out_shape=jax.ShapeDtypeStruct((B, S, D), x.dtype),
        grid_spec=pltpu.PrefetchScalarGridSpec(
            num_scalar_prefetch=0,
            grid=grid,
            in_specs=[
                pl.BlockSpec((block_b, S, D), lambda b: (b, 0, 0)),
                pl.BlockSpec((D, H), lambda b: (0, 0)),
                pl.BlockSpec((1, H), lambda b: (0, 0)),
                pl.BlockSpec((1, H), lambda b: (0, 0)),
            ],
            out_specs=pl.BlockSpec((block_b, S, D), lambda b: (b, 0, 0)),
        ),
        compiler_params=pltpu.CompilerParams(
            dimension_semantics=("parallel",),
            vmem_limit_bytes=vmem_limit,
        ),
    )(x, w1_c, b1_r, w2_row)


# ---------------------------------------------------------------------------
# Reference + test
# ---------------------------------------------------------------------------

def xavier_uniform(key, shape, fan_in, fan_out, dtype=jnp.float32):
    bound = math.sqrt(6.0 / (fan_in + fan_out))
    return jax.random.uniform(key, shape, dtype=dtype, minval=-bound,
                              maxval=bound)


def reference(x, w1, b1, w2):
    h = jnp.tanh(jnp.einsum("bsd,dh->bsh", x, w1,
                            precision=jax.lax.Precision.HIGHEST) + b1)
    scores = jnp.einsum("bsh,ho->bso", h, w2,
                        precision=jax.lax.Precision.HIGHEST)
    attn = jax.nn.softmax(scores, axis=-2)
    return x * attn


if __name__ == "__main__":
    # Lane-dense small shapes: D, H multiples of 128; S a multiple of 16 so the
    # (Bblk, S, D) -> (Bblk*S, D) reshape is layout-free for f32 and bf16.
    B, S, D, H = 4, 16, 128, 128

    key = jax.random.PRNGKey(0)
    kx, k1, k2 = jax.random.split(key, 3)

    x = jax.random.normal(kx, (B, S, D), dtype=jnp.float32)

    # nn.Linear(D, H): torch weight [H, D] xavier-uniform, bias zeros.
    # Stored transposed as [D, H]; fan_in=D, fan_out=H.
    w1 = xavier_uniform(k1, (D, H), fan_in=D, fan_out=H)
    b1 = jnp.zeros((1, H), dtype=jnp.float32)
    # nn.Linear(H, 1, bias=False): torch weight [1, H]; stored as [H, 1].
    w2 = xavier_uniform(k2, (H, 1), fan_in=H, fan_out=1)

    ref = reference(x, w1, b1, w2)

    # 1) f32 MXU feed, exact reciprocal.
    out_f32 = jax.block_until_ready(
        additive_attention(x, w1, b1, w2, use_bf16=False))
    assert out_f32.shape == (B, S, D)
    assert jnp.allclose(out_f32, ref, atol=2e-2, rtol=2e-2), "f32 path mismatch"

    # 2) Fast path: bf16 MXU feed + approx reciprocal (small numeric drift).
    out_bf16 = jax.block_until_ready(
        additive_attention(x, w1, b1, w2, use_bf16=True))
    assert out_bf16.shape == (B, S, D)
    assert jnp.allclose(out_bf16, ref, atol=5e-2, rtol=5e-2), "bf16 path mismatch"

    # 3) bf16 I/O path (halves HBM traffic for the surrounding model).
    x_bf16 = x.astype(jnp.bfloat16)
    out_bf_io = jax.block_until_ready(
        additive_attention(x_bf16, w1, b1, w2, use_bf16=True))
    assert out_bf_io.shape == (B, S, D) and out_bf_io.dtype == jnp.bfloat16
    assert jnp.allclose(out_bf_io.astype(jnp.float32), ref,
                        atol=1e-1, rtol=1e-1), "bf16 I/O path mismatch"

    # 4) S-tiled fallback (auto-selected when one batch element at full S does
    #    not fit the VMEM budget; forced here at small shapes to exercise it).
    out_tiled = jax.block_until_ready(
        additive_attention(x, w1, b1, w2, use_bf16=False,
                           force_s_tiled=True, seq_block=8))
    assert out_tiled.shape == (B, S, D)
    assert jnp.allclose(out_tiled, ref, atol=2e-2, rtol=2e-2), "S-tiled mismatch"

    print("KERNEL_OK")
</pallas_src>

<mosaic_0001>
module attributes {stable_mosaic.version = 11 : i64} {
  func.func @_fused_kernel(%arg0: i32, %arg1: memref<2x16x128xf32, #tpu.memory_space<vmem>>, %arg2: memref<128x128xf32, #tpu.memory_space<vmem>>, %arg3: memref<1x128xf32, #tpu.memory_space<vmem>>, %arg4: memref<1x128xf32, #tpu.memory_space<vmem>>, %arg5: memref<2x16x128xf32, #tpu.memory_space<vmem>>) attributes {dimension_semantics = [#tpu.dimension_semantics<parallel>], iteration_bounds = array<i64: 2>, scalar_prefetch = 0 : i64, scratch_operands = 0 : i64, tpu.core_type = #tpu.core_type<tc>, window_params = [{transform_indices = @transform_0, window_bounds = array<i64: 2, 16, 128>}, {pipeline_mode = #tpu.pipeline_mode<synchronous>, transform_indices = @transform_1, window_bounds = array<i64: 128, 128>}, {pipeline_mode = #tpu.pipeline_mode<synchronous>, transform_indices = @transform_2, window_bounds = array<i64: 1, 128>}, {pipeline_mode = #tpu.pipeline_mode<synchronous>, transform_indices = @transform_3, window_bounds = array<i64: 1, 128>}, {transform_indices = @transform_4, window_bounds = array<i64: 2, 16, 128>}]} {
    %c0 = arith.constant 0 : index
    %c0_0 = arith.constant 0 : index
    %c0_1 = arith.constant 0 : index
    %0 = vector.load %arg1[%c0, %c0_0, %c0_1] : memref<2x16x128xf32, #tpu.memory_space<vmem>>, vector<2x16x128xf32>
    %1 = vector.shape_cast %0 : vector<2x16x128xf32> to vector<32x128xf32>
    %c0_2 = arith.constant 0 : index
    %c0_3 = arith.constant 0 : index
    %2 = vector.load %arg2[%c0_2, %c0_3] : memref<128x128xf32, #tpu.memory_space<vmem>>, vector<128x128xf32>
    %cst = arith.constant dense<0.000000e+00> : vector<32x128xf32>
    %3 = tpu.matmul %1, %2, %cst {dimension_numbers = #tpu.dot_dimension_numbers<[1], [0], [0], [1], [0, 0, 1, 1], [], []>} : vector<32x128xf32>, vector<128x128xf32>, vector<32x128xf32> -> vector<32x128xf32>
    %c0_4 = arith.constant 0 : index
    %c0_5 = arith.constant 0 : index
    %4 = vector.load %arg3[%c0_4, %c0_5] : memref<1x128xf32, #tpu.memory_space<vmem>>, vector<1x128xf32>
    %5 = vector.broadcast %4 : vector<1x128xf32> to vector<32x128xf32>
    %6 = arith.addf %3, %5 : vector<32x128xf32>
    %7 = math.tanh %6 : vector<32x128xf32>
    %c0_6 = arith.constant 0 : index
    %c0_7 = arith.constant 0 : index
    %8 = vector.load %arg4[%c0_6, %c0_7] : memref<1x128xf32, #tpu.memory_space<vmem>>, vector<1x128xf32>
    %9 = vector.broadcast %8 : vector<1x128xf32> to vector<32x128xf32>
    %10 = arith.mulf %7, %9 : vector<32x128xf32>
    %cst_8 = arith.constant dense<0.000000e+00> : vector<32xf32>
    %11 = vector.multi_reduction <add>, %10, %cst_8 [1] : vector<32x128xf32> to vector<32xf32>
    %12 = vector.shape_cast %11 : vector<32xf32> to vector<32x1xf32>
    %13 = vector.shape_cast %12 : vector<32x1xf32> to vector<2x16x1xf32>
    %cst_9 = arith.constant dense<0xFF800000> : vector<2x1xf32>
    %14 = vector.multi_reduction <maximumf>, %13, %cst_9 [1] : vector<2x16x1xf32> to vector<2x1xf32>
    %15 = vector.shape_cast %14 : vector<2x1xf32> to vector<2x1x1xf32>
    %16 = vector.broadcast %15 : vector<2x1x1xf32> to vector<2x16x1xf32>
    %17 = arith.subf %13, %16 : vector<2x16x1xf32>
    %18 = math.exp %17 : vector<2x16x1xf32>
    %cst_10 = arith.constant dense<0.000000e+00> : vector<2x1xf32>
    %19 = vector.multi_reduction <add>, %18, %cst_10 [1] : vector<2x16x1xf32> to vector<2x1xf32>
    %20 = vector.shape_cast %19 : vector<2x1xf32> to vector<2x1x1xf32>
    %21 = tpu.reciprocal %20 : vector<2x1x1xf32> -> vector<2x1x1xf32>
    %22 = vector.broadcast %21 : vector<2x1x1xf32> to vector<2x16x1xf32>
    %23 = arith.mulf %18, %22 : vector<2x16x1xf32>
    %24 = vector.broadcast %23 : vector<2x16x1xf32> to vector<2x16x128xf32>
    %25 = arith.mulf %0, %24 : vector<2x16x128xf32>
    %c0_11 = arith.constant 0 : index
    %c0_12 = arith.constant 0 : index
    %c0_13 = arith.constant 0 : index
    %26 = vector.load %arg5[%c0_11, %c0_12, %c0_13] : memref<2x16x128xf32, #tpu.memory_space<vmem>>, vector<2x16x128xf32>
    tpu.vector_store %arg5[%c0_11, %c0_12, %c0_13], %25 {strides = array<i32>} : memref<2x16x128xf32, #tpu.memory_space<vmem>>, vector<2x16x128xf32>,
    return
  }
  func.func @transform_0(%arg0: i32) -> (i32, i32, i32) {
    %c0_i32 = arith.constant 0 : i32
    %c0_i32_0 = arith.constant 0 : i32
    %c0_i32_1 = arith.constant 0 : i32
    return %arg0, %c0_i32, %c0_i32_0 : i32, i32, i32
  }
  func.func @transform_1(%arg0: i32) -> (i32, i32) {
    %c0_i32 = arith.constant 0 : i32
    %c0_i32_0 = arith.constant 0 : i32
    %c0_i32_1 = arith.constant 0 : i32
    return %c0_i32, %c0_i32_0 : i32, i32
  }
  func.func @transform_2(%arg0: i32) -> (i32, i32) {
    %c0_i32 = arith.constant 0 : i32
    %c0_i32_0 = arith.constant 0 : i32
    %c0_i32_1 = arith.constant 0 : i32
    return %c0_i32, %c0_i32_0 : i32, i32
  }
  func.func @transform_3(%arg0: i32) -> (i32, i32) {
    %c0_i32 = arith.constant 0 : i32
    %c0_i32_0 = arith.constant 0 : i32
    %c0_i32_1 = arith.constant 0 : i32
    return %c0_i32, %c0_i32_0 : i32, i32
  }
  func.func @transform_4(%arg0: i32) -> (i32, i32, i32) {
    %c0_i32 = arith.constant 0 : i32
    %c0_i32_0 = arith.constant 0 : i32
    %c0_i32_1 = arith.constant 0 : i32
    return %arg0, %c0_i32, %c0_i32_0 : i32, i32, i32
  }
}

</mosaic_0001>

<llo_original>
// kernel: tpu_custom_call.1
$region0: #{tpu_custom_call.1}
  #allocation0 [shape = 'u32[]', space=smem, size = 0x4, offset = 0x4, fixed_abs, tag = 'smem constant byte address 0x4 - core index']
  #allocation1 [shape = 'u32[144,128]{1,0:T(1,128)}', space=vmem, size = 0x12000, scoped, tag = 'internal scratch']
  %s0 = inlined_call_operand.hbm [shape: f32[4,16,128], index: 0, kind: input, shape index: {}]
  %s1 = inlined_call_operand.hbm [shape: f32[128,128], index: 1, kind: input, shape index: {}]
  %s2 = inlined_call_operand.vmem [shape: f32[1,128], index: 2, kind: input, shape index: {}]
  %s3 = inlined_call_operand.vmem [shape: f32[1,128], index: 3, kind: input, shape index: {}]
  %s4 = inlined_call_operand.hbm [shape: f32[4,16,128], index: 4, kind: output, shape index: {}]
  %s5 = sld [smem:[#allocation0]]
  $region57: #{tpu_custom_call.1} parent=0
    _
  %s7 = ssub.s32 1, %s5
  %s8 = scalar_select 0, %s7, %s5
  $region1: #{tpu_custom_call.1} parent=0
    #allocation2 [shape = 'u8[32768]{0}', space=vmem, size = 0x8000, scoped, tag = 'input window, operand 0']
    #allocation3 [shape = 's32[2]{0}', space=sflag, size = 0x8, scoped, tag = 'scoped memory for tpu_custom_call.1']
    #allocation4 [shape = 's32[2]{0}', space=sflag, size = 0x8, scoped, tag = 'scoped memory for tpu_custom_call.1']
    #allocation5 [shape = 'u8[65536]{0}', space=vmem, size = 0x10000, scoped, tag = 'input window, operand 1, single buffered']
    #allocation6 [shape = 's32[1]{0}', space=sflag, size = 0x4, scoped, tag = 'scoped memory for tpu_custom_call.1']
    #allocation7 [shape = 'u8[32768]{0}', space=vmem, size = 0x8000, scoped, tag = 'output window, operand 0']
    %9 = vsyncpa [#allocation3], 0
    %s10 = scalar_lea.sflag [#allocation3], 1
    %11 = vsyncpa %s10, 0
    %12 = vsyncpa [#allocation6], 0
    %13 = vsyncpa [#allocation4], 0
    %s14 = scalar_lea.sflag [#allocation4], 1
    %15 = vsyncpa %s14, 0
    loop: start=0, step=1, limit=4
    $region2: #{tpu_custom_call.1} parent=1 // loop_pre_header
      _
    $region3: #{tpu_custom_call.1} parent=1 // loop_header
      %s17 = sphi 0, %s21
      %p18 = scmp.ge.s32.totalorder %s17, 4
      %s27 = sphi 0, %s29
      %s30 = sphi 0, %s27
      %s31 = sphi 0, %s30
      %s47 = sphi 0, %s31
      %s51 = sphi 0, %s51
      %s53 = sphi 0, %s51
      %s54 = sphi 0, %s53
      %s68 = sphi 0, %s54
      %s72 = sphi 0, %s72
      %s74 = sphi 0, %s72
      %s75 = sphi 0, %s74
      %s89 = sphi 0, %s75
      %s93 = sphi 0, %s93
      %s95 = sphi 0, %s93
      %s96 = sphi 0, %s95
      %s110 = sphi 0, %s96
      %s116 = sphi 0, %s118
      %s119 = sphi 0, %s116
      %s120 = sphi 0, %s119
      %s136 = sphi 0, %s120
    $region4: #{tpu_custom_call.1} parent=1 // loop_header_branch
      %20 = sbr.rel (%p18) target = $region8
    $region5: #{tpu_custom_call.1} parent=1 // loop_body
      %s22 = ssub.s32 %s17, 1
      %s23 = ssub.s32 %s17, 2
      %s24 = sadd.s32 %s17, 1
      %s25 = ssub.s32 %s17, %s24
      %p26 = scmp.eq.s32.totalorder %s25, 0
      %s28 = sadd.s32 %s27, 1
      %s29 = scalar_select %p26, %s27, %s28
      %p32 = pneg %p26
      %p33 = scmp.eq.s32.totalorder %s17, 1
      %p34 = por %p32, %p33
      %p35 = scmp.ne.s32.totalorder %s27, %s30
      %p36 = scmp.eq.s32.totalorder %s17, 0
      %p37 = por %p35, %p36
      %p38 = scmp.ne.s32.totalorder %s27, %s30
      %p39 = scmp.eq.s32.totalorder %s22, 1
      %p40 = por %p38, %p39
      %p41 = scmp.ne.s32.totalorder %s30, %s31
      %p42 = scmp.eq.s32.totalorder %s22, 0
      %p43 = por %p41, %p42
      %p44 = scmp.ne.s32.totalorder %s30, %s31
      %p45 = scmp.eq.s32.totalorder %s23, 1
      %p46 = por %p44, %p45
      %p48 = scmp.ne.s32.totalorder %s31, %s47
      %p49 = scmp.eq.s32.totalorder %s23, 0
      %p50 = por %p48, %p49
      %s52 = sadd.s32 %s51, 1
      %p55 = scmp.eq.s32.totalorder %s17, 1
      %p56 = scmp.ne.s32.totalorder %s51, %s53
      %p57 = scmp.eq.s32.totalorder %s17, 0
      %p58 = por %p56, %p57
      %p59 = scmp.ne.s32.totalorder %s51, %s53
      %p60 = scmp.eq.s32.totalorder %s22, 1
      %p61 = por %p59, %p60
      %p62 = scmp.ne.s32.totalorder %s53, %s54
      %p63 = scmp.eq.s32.totalorder %s22, 0
      %p64 = por %p62, %p63
      %p65 = scmp.ne.s32.totalorder %s53, %s54
      %p66 = scmp.eq.s32.totalorder %s23, 1
      %p67 = por %p65, %p66
      %p69 = scmp.ne.s32.totalorder %s54, %s68
      %p70 = scmp.eq.s32.totalorder %s23, 0
      %p71 = por %p69, %p70
      %s73 = sadd.s32 %s72, 1
      %p76 = scmp.eq.s32.totalorder %s17, 1
      %p77 = scmp.ne.s32.totalorder %s72, %s74
      %p78 = scmp.eq.s32.totalorder %s17, 0
      %p79 = por %p77, %p78
      %p80 = scmp.ne.s32.totalorder %s72, %s74
      %p81 = scmp.eq.s32.totalorder %s22, 1
      %p82 = por %p80, %p81
      %p83 = scmp.ne.s32.totalorder %s74, %s75
      %p84 = scmp.eq.s32.totalorder %s22, 0
      %p85 = por %p83, %p84
      %p86 = scmp.ne.s32.totalorder %s74, %s75
      %p87 = scmp.eq.s32.totalorder %s23, 1
      %p88 = por %p86, %p87
      %p90 = scmp.ne.s32.totalorder %s75, %s89
      %p91 = scmp.eq.s32.totalorder %s23, 0
      %p92 = por %p90, %p91
      %s94 = sadd.s32 %s93, 1
      %p97 = scmp.eq.s32.totalorder %s17, 1
      %p98 = scmp.ne.s32.totalorder %s93, %s95
      %p99 = scmp.eq.s32.totalorder %s17, 0
      %p100 = por %p98, %p99
      %p101 = scmp.ne.s32.totalorder %s93, %s95
      %p102 = scmp.eq.s32.totalorder %s22, 1
      %p103 = por %p101, %p102
      %p104 = scmp.ne.s32.totalorder %s95, %s96
      %p105 = scmp.eq.s32.totalorder %s22, 0
      %p106 = por %p104, %p105
      %p107 = scmp.ne.s32.totalorder %s95, %s96
      %p108 = scmp.eq.s32.totalorder %s23, 1
      %p109 = por %p107, %p108
      %p111 = scmp.ne.s32.totalorder %s96, %s110
      %p112 = scmp.eq.s32.totalorder %s23, 0
      %p113 = por %p111, %p112
      %s114 = ssub.s32 %s17, %s24
      %p115 = scmp.eq.s32.totalorder %s114, 0
      %s117 = sadd.s32 %s116, 1
      %s118 = scalar_select %p115, %s116, %s117
      %p121 = pneg %p115
      %p122 = scmp.eq.s32.totalorder %s17, 1
      %p123 = por %p121, %p122
      %p124 = scmp.ne.s32.totalorder %s116, %s119
      %p125 = scmp.eq.s32.totalorder %s17, 0
      %p126 = por %p124, %p125
      %p127 = scmp.ne.s32.totalorder %s116, %s119
      %p128 = scmp.eq.s32.totalorder %s22, 1
      %p129 = por %p127, %p128
      %p130 = scmp.ne.s32.totalorder %s119, %s120
      %p131 = scmp.eq.s32.totalorder %s22, 0
      %p132 = por %p130, %p131
      %p133 = scmp.ne.s32.totalorder %s119, %s120
      %p134 = scmp.eq.s32.totalorder %s23, 1
      %p135 = por %p133, %p134
      %p137 = scmp.ne.s32.totalorder %s120, %s136
      %p138 = scmp.eq.s32.totalorder %s23, 0
      %p139 = por %p137, %p138
      %p140 = scmp.le.s32.totalorder 1, %s17
      %p141 = scmp.lt.s32.totalorder %s17, 3
      %p142 = pnand %p140, %p141
      %p143 = pneg %p142
      // Predicated region
      $region9: #{tpu_custom_call.1} parent=5 // pred_check
        _
      $region10: #{tpu_custom_call.1} parent=5 // pred_check_branch
        %145 = sbr.rel (%p142) target = $region12
      $region11: #{tpu_custom_call.1} parent=5 // pred_region
        %s146 = ssub.s32 %s17, 1
        // Predicated region
        $region13: #{tpu_custom_call.1} parent=11 // pred_check
          %p147 = pneg %p64
        $region14: #{tpu_custom_call.1} parent=11 // pred_check_branch
          %149 = sbr.rel (%p147) target = $region16
        $region15: #{tpu_custom_call.1} parent=11 // pred_region
          %s151 = ssub.s32 2048, 2048
          %152 = vsyncadd [#allocation6], %s151
          %s153 = sshll.u32 [#allocation5], 4
          %s154 = int_to_ptr.vmem [resolvable:$true] %s153
          %159 = dma.hbm_to_vmem [thread:$0]  %s1, 2048, %s154, [#allocation6], 128, 128, 8
        $region16: #{tpu_custom_call.1} parent=11 // pred_fallthru
          _
        // Predicated region
        $region17: #{tpu_custom_call.1} parent=11 // pred_check
          %p160 = pneg %p85
        $region18: #{tpu_custom_call.1} parent=11 // pred_check_branch
          %162 = sbr.rel (%p160) target = $region20
        $region19: #{tpu_custom_call.1} parent=11 // pred_region
          _
        $region20: #{tpu_custom_call.1} parent=11 // pred_fallthru
          _
        // Predicated region
        $region21: #{tpu_custom_call.1} parent=11 // pred_check
          %p163 = pneg %p106
        $region22: #{tpu_custom_call.1} parent=11 // pred_check_branch
          %165 = sbr.rel (%p163) target = $region24
        $region23: #{tpu_custom_call.1} parent=11 // pred_region
          _
        $region24: #{tpu_custom_call.1} parent=11 // pred_fallthru
          _
      $region12: #{tpu_custom_call.1} parent=5 // pred_fallthru
        _
      %p166 = scmp.lt.s32.totalorder %s17, 2
      // Predicated region
      $region25: #{tpu_custom_call.1} parent=5 // pred_check
        %p167 = pneg %p166
      $region26: #{tpu_custom_call.1} parent=5 // pred_check_branch
        %169 = sbr.rel (%p167) target = $region28
      $region27: #{tpu_custom_call.1} parent=5 // pred_region
        // Predicated region
        $region29: #{tpu_custom_call.1} parent=27 // pred_check
          %p170 = pneg %p37
        $region30: #{tpu_custom_call.1} parent=27 // pred_check_branch
          %172 = sbr.rel (%p170) target = $region32
        $region31: #{tpu_custom_call.1} parent=27 // pred_region
          %s173 = sand.u32 %s27, 1
          %s174 = scalar_lea.sflag [#allocation3], %s173
          %s175 = sand.u32 %s27, 1
          %s176 = smul.addr %s175, 32
          %s177 = scalar_lea.vmem [#allocation2], %s176
          %s178 = smul.u32 2, %s17
          %s180 = ssub.s32 512, 512
          %181 = vsyncadd %s174, %s180
          %s182 = smul.addr %s178, 2
          %s183 = smul.addr %s182, 128
          %s184 = scalar_lea.hbm %s0, %s183
          %s185 = sshll.u32 %s177, 4
          %s186 = int_to_ptr.vmem [resolvable:$true] %s185
          %191 = dma.hbm_to_vmem [thread:$0]  %s184, 512, %s186, %s174, 128, 128, 8
        $region32: #{tpu_custom_call.1} parent=27 // pred_fallthru
          _
      $region28: #{tpu_custom_call.1} parent=5 // pred_fallthru
        _
      %p192 = scmp.le.s32.totalorder 1, %s17
      %p193 = scmp.lt.s32.totalorder %s17, 3
      %p194 = pnand %p192, %p193
      %p195 = pneg %p194
      // Predicated region
      $region33: #{tpu_custom_call.1} parent=5 // pred_check
        _
      $region34: #{tpu_custom_call.1} parent=5 // pred_check_branch
        %197 = sbr.rel (%p194) target = $region36
      $region35: #{tpu_custom_call.1} parent=5 // pred_region
        %s198 = ssub.s32 %s17, 1
        %s199 = sand.u32 %s30, 1
        %s200 = scalar_lea.sflag [#allocation3], %s199
        %s201 = sand.u32 %s30, 1
        %s202 = smul.addr %s201, 32
        %s203 = scalar_lea.vmem [#allocation2], %s202
        // Predicated region
        $region37: #{tpu_custom_call.1} parent=35 // pred_check
          %p204 = pneg %p43
        $region38: #{tpu_custom_call.1} parent=35 // pred_check_branch
          %206 = sbr.rel (%p204) target = $region40
        $region39: #{tpu_custom_call.1} parent=35 // pred_region
          %207 = dma.done %s200, 512
        $region40: #{tpu_custom_call.1} parent=35 // pred_fallthru
          _
        // Predicated region
        $region41: #{tpu_custom_call.1} parent=35 // pred_check
          %p208 = pneg %p64
        $region42: #{tpu_custom_call.1} parent=35 // pred_check_branch
          %210 = sbr.rel (%p208) target = $region44
        $region43: #{tpu_custom_call.1} parent=35 // pred_region
          %211 = dma.done [#allocation6], 2048
        $region44: #{tpu_custom_call.1} parent=35 // pred_fallthru
          _
        %s212 = sand.u32 %s30, 1
        %s213 = scalar_lea.sflag [#allocation3], %s212
        %s214 = sand.u32 %s30, 1
        %s215 = smul.addr %s214, 32
        %s216 = scalar_lea.vmem [#allocation2], %s215
        %p217 = pneg %p43
        %p218 = pneg %p40
        %p219 = pneg %p64
        %p220 = pneg %p61
        %p221 = pneg %p85
        %p222 = pneg %p82
        %p223 = pneg %p106
        %p224 = pneg %p103
        %p225 = pneg %p132
        %p226 = pneg %p129
        %s227 = sand.u32 %s119, 1
        %s228 = scalar_lea.sflag [#allocation4], %s227
        %s229 = sand.u32 %s119, 1
        %s230 = smul.addr %s229, 32
        %s231 = scalar_lea.vmem [#allocation7], %s230
        %s232 = smul.u32 2, %s22
        %s233 = smul.u32 2, %s22
        %v234 = vld [vmem:[%s203] sm:$0xff]
        %v235 = vld [vmem:[%s203 + $0x8] sm:$0xff]
        %v236 = vld [vmem:[%s203 + $0x10] sm:$0xff]
        %v237 = vld [vmem:[%s203 + $0x18] sm:$0xff]
        %v238 = vld [vmem:[#allocation5] sm:$0xff]
        %v239 = vld [vmem:[#allocation5 + $0x8] sm:$0xff]
        %v240 = vld [vmem:[#allocation5 + $0x10] sm:$0xff]
        %v241 = vld [vmem:[#allocation5 + $0x18] sm:$0xff]
        %v242 = vld [vmem:[#allocation5 + $0x20] sm:$0xff]
        %v243 = vld [vmem:[#allocation5 + $0x28] sm:$0xff]
        %v244 = vld [vmem:[#allocation5 + $0x30] sm:$0xff]
        %v245 = vld [vmem:[#allocation5 + $0x38] sm:$0xff]
        %v246 = vld [vmem:[#allocation5 + $0x40] sm:$0xff]
        %v247 = vld [vmem:[#allocation5 + $0x48] sm:$0xff]
        %v248 = vld [vmem:[#allocation5 + $0x50] sm:$0xff]
        %v249 = vld [vmem:[#allocation5 + $0x58] sm:$0xff]
        %v250 = vld [vmem:[#allocation5 + $0x60] sm:$0xff]
        %v251 = vld [vmem:[#allocation5 + $0x68] sm:$0xff]
        %v252 = vld [vmem:[#allocation5 + $0x70] sm:$0xff]
        %v253 = vld [vmem:[#allocation5 + $0x78] sm:$0xff]
        %v254 = vld [vmem:[%s2] sm:$0x1]
        %v256 = vlaneseq
        %v257 = vshrl.u32 %v256, 7
        %v258 = vsub.s32 0, %v257
        %v259 = vrot.slane %v254, %v258
        %261 = vmatprep.subr.mxu0 0.0
        %262 = vmatpush1.msra.mxu0 %v238
        %263 = vmatprep.subr.mxu0 0.0
        %264 = vmatpush1.msra.mxu0 %v239
        %265 = vmatprep.subr.mxu0 0.0
        %266 = vmatpush1.msra.mxu0 %v240
        %267 = vmatprep.subr.mxu0 0.0
        %268 = vmatpush1.msra.mxu0 %v241
        %269 = vmatprep.subr.mxu0 0.0
        %270 = vmatpush1.msra.mxu0 %v242
        %271 = vmatprep.subr.mxu0 0.0
        %272 = vmatpush1.msra.mxu0 %v243
        %273 = vmatprep.subr.mxu0 0.0
        %274 = vmatpush1.msra.mxu0 %v244
        %275 = vmatprep.subr.mxu0 0.0
        %276 = vmatpush1.msra.mxu0 %v245
        %277 = vmatprep.subr.mxu0 0.0
        %278 = vmatpush1.msra.mxu0 %v246
        %279 = vmatprep.subr.mxu0 0.0
        %280 = vmatpush1.msra.mxu0 %v247
        %281 = vmatprep.subr.mxu0 0.0
        %282 = vmatpush1.msra.mxu0 %v248
        %283 = vmatprep.subr.mxu0 0.0
        %284 = vmatpush1.msra.mxu0 %v249
        %285 = vmatprep.subr.mxu0 0.0
        %286 = vmatpush1.msra.mxu0 %v250
        %287 = vmatprep.subr.mxu0 0.0
        %288 = vmatpush1.msra.mxu0 %v251
        %289 = vmatprep.subr.mxu0 0.0
        %290 = vmatpush1.msra.mxu0 %v252
        %291 = vmatprep.subr.mxu0 0.0
        %292 = vmatpush1.msra.mxu0 %v253
        %293 = vmatprep.subr.mxu0 0.0
        %294 = vmatpush1.msra.mxu0 0.0
        %295 = vmatprep.subr.mxu0 0.0
        %296 = vmatpush1.msra.mxu0 0.0
        %297 = vmatprep.subr.mxu0 0.0
        %298 = vmatpush1.msra.mxu0 0.0
        %299 = vmatprep.subr.mxu0 0.0
        %300 = vmatpush1.msra.mxu0 0.0
        %301 = vmatprep.subr.mxu0 0.0
        %302 = vmatpush1.msra.mxu0 0.0
        %303 = vmatprep.subr.mxu0 0.0
        %304 = vmatpush1.msra.mxu0 0.0
        %305 = vmatprep.subr.mxu0 0.0
        %306 = vmatpush1.msra.mxu0 0.0
        %307 = vmatprep.subr.mxu0 0.0
        %308 = vmatpush1.msra.mxu0 0.0
        %309 = vmatprep.subr.mxu0 0.0
        %310 = vmatpush1.msra.mxu0 0.0
        %311 = vmatprep.subr.mxu0 0.0
        %312 = vmatpush1.msra.mxu0 0.0
        %313 = vmatprep.subr.mxu0 0.0
        %314 = vmatpush1.msra.mxu0 0.0
        %315 = vmatprep.subr.mxu0 0.0
        %316 = vmatpush1.msra.mxu0 0.0
        %317 = vmatprep.subr.mxu0 0.0
        %318 = vmatpush1.msra.mxu0 0.0
        %319 = vmatprep.subr.mxu0 0.0
        %320 = vmatpush1.msra.mxu0 0.0
        %321 = vmatprep.subr.mxu0 0.0
        %322 = vmatpush1.msra.mxu0 0.0
        %323 = vmatprep.subr.mxu0 0.0
        %324 = vmatpush1.msra.mxu0 0.0
        %325 = vmatprep.mubr.f32.mxu0 0.0
        %326 = vmatmul.mubr.f32.gmra.mrb[0].mxu0 %v234
        %v327 = vpop.f32.mrb[0].mxu0
        %v328 = vadd.f32 %v259, %v327
        %v329 = vpop.f32.mrb[0].mxu0
        %330 = vmatprep.mubr.f32.mxu0 0.0
        %331 = vmatmul.mubr.f32.gmra.mrb[0].mxu0 %v235
        %v332 = vpop.f32.mrb[0].mxu0
        %v333 = vadd.f32 %v259, %v332
        %v334 = vpop.f32.mrb[0].mxu0
        %335 = vmatprep.mubr.f32.mxu0 0.0
        %336 = vmatmul.mubr.f32.gmra.mrb[0].mxu0 %v236
        %v337 = vpop.f32.mrb[0].mxu0
        %v338 = vadd.f32 %v259, %v337
        %v339 = vpop.f32.mrb[0].mxu0
        %340 = vmatprep.mubr.f32.mxu0 0.0
        %341 = vmatmul.mubr.f32.gmra.mrb[0].mxu0 %v237
        %v342 = vpop.f32.mrb[0].mxu0
        %v343 = vadd.f32 %v259, %v342
        %v344 = vpop.f32.mrb[0].mxu0
        %345 = vdwg.mxu0
        %v346 = vtanh.pop %v328
        %v347 = vtanh.pop %v333
        %v348 = vtanh.pop %v338
        %v349 = vtanh.pop %v343
        %v350 = vld [vmem:[%s3] sm:$0x1]
        %v352 = vlaneseq
        %v353 = vshrl.u32 %v352, 7
        %v354 = vsub.s32 0, %v353
        %v355 = vrot.slane %v350, %v354
        %v357 = vmul.f32 %v346, %v355
        %v358 = vmul.f32 %v347, %v355
        %v359 = vmul.f32 %v348, %v355
        %v360 = vmul.f32 %v349, %v355
        %361 = vadd.xlane.f32.xlu0 %v357
        %v362 = vpop.xlane.xlu0 %361
        %363 = vadd.xlane.f32.xlu0 %v358
        %v364 = vpop.xlane.xlu0 %363
        %365 = vadd.xlane.f32.xlu0 %v359
        %v366 = vpop.xlane.xlu0 %365
        %367 = vadd.xlane.f32.xlu0 %v360
        %v368 = vpop.xlane.xlu0 %367
        %v369 = vmax.f32 %v362, %v364
        %v370 = vrot.slane %v369, 4
        %v371 = vmax.f32 %v369, %v370
        %v372 = vrot.slane %v371, 2
        %v373 = vmax.f32 %v371, %v372
        %v374 = vrot.slane %v373, 1
        %v375 = vmax.f32 %v373, %v374
        %v376 = vmax.f32 %v366, %v368
        %v377 = vrot.slane %v376, 4
        %v378 = vmax.f32 %v376, %v377
        %v379 = vrot.slane %v378, 2
        %v380 = vmax.f32 %v378, %v379
        %v381 = vrot.slane %v380, 1
        %v382 = vmax.f32 %v380, %v381
        %v383 = vsub.f32 %v362, %v375
        %v384 = vsub.f32 %v364, %v375
        %v385 = vsub.f32 %v366, %v382
        %v386 = vsub.f32 %v368, %v382
        %v387 = vmul.f32 %v383, 1.442695
        %v388 = vpow.pop %v387
        %v389 = vmul.f32 %v384, 1.442695
        %v390 = vpow.pop %v389
        %v391 = vmul.f32 %v385, 1.442695
        %v392 = vpow.pop %v391
        %v393 = vmul.f32 %v386, 1.442695
        %v394 = vpow.pop %v393
        %v395 = vadd.f32 %v388, %v390
        %v396 = vrot.slane %v395, 4
        %v397 = vadd.f32 %v395, %v396
        %v398 = vrot.slane %v397, 2
        %v399 = vadd.f32 %v397, %v398
        %v400 = vrot.slane %v399, 1
        %v401 = vadd.f32 %v399, %v400
        %v402 = vadd.f32 %v392, %v394
        %v403 = vrot.slane %v402, 4
        %v404 = vadd.f32 %v402, %v403
        %v405 = vrot.slane %v404, 2
        %v406 = vadd.f32 %v404, %v405
        %v407 = vrot.slane %v406, 1
        %v408 = vadd.f32 %v406, %v407
        %v409 = vrcp.pop %v401
        %v410 = vrcp.pop %v408
        %v411 = vmul.f32 %v388, %v409
        %v412 = vmul.f32 %v390, %v409
        %v413 = vmul.f32 %v392, %v410
        %v414 = vmul.f32 %v394, %v410
        %v415 = vmul.f32 %v234, %v411
        %v416 = vmul.f32 %v235, %v412
        %v417 = vmul.f32 %v236, %v413
        %v418 = vmul.f32 %v237, %v414
        %419 = vst [vmem:[%s231] sm:$0xff] %v415
        %420 = vst [vmem:[%s231 + $0x8] sm:$0xff] %v416
        %421 = vst [vmem:[%s231 + $0x10] sm:$0xff] %v417
        %422 = vst [vmem:[%s231 + $0x18] sm:$0xff] %v418
        %s423 = sand.u32 %s119, 1
        %s424 = scalar_lea.sflag [#allocation4], %s423
        %s425 = sand.u32 %s119, 1
        %s426 = smul.addr %s425, 32
        %s427 = scalar_lea.vmem [#allocation7], %s426
        // Predicated region
        $region45: #{tpu_custom_call.1} parent=35 // pred_check
          %p428 = pneg %p129
        $region46: #{tpu_custom_call.1} parent=35 // pred_check_branch
          %430 = sbr.rel (%p428) target = $region48
        $region47: #{tpu_custom_call.1} parent=35 // pred_region
          %s431 = smul.u32 2, %s22
          %s433 = ssub.s32 512, 512
          %434 = vsyncadd %s424, %s433
          %s435 = smul.addr %s431, 2
          %s436 = smul.addr %s435, 128
          %s437 = scalar_lea.hbm %s4, %s436
          %s438 = sshll.u32 %s427, 4
          %s439 = int_to_ptr.vmem [resolvable:$true] %s438
          %444 = dma.vmem_to_hbm [thread:$0]  %s439, 512, %s437, %s424, 128, 128, 8
        $region48: #{tpu_custom_call.1} parent=35 // pred_fallthru
          _
      $region36: #{tpu_custom_call.1} parent=5 // pred_fallthru
        _
      %p445 = scmp.le.s32.totalorder 2, %s17
      // Predicated region
      $region49: #{tpu_custom_call.1} parent=5 // pred_check
        %p446 = pneg %p445
      $region50: #{tpu_custom_call.1} parent=5 // pred_check_branch
        %448 = sbr.rel (%p446) target = $region52
      $region51: #{tpu_custom_call.1} parent=5 // pred_region
        %s449 = ssub.s32 %s17, 2
        // Predicated region
        $region53: #{tpu_custom_call.1} parent=51 // pred_check
          %p450 = pneg %p135
        $region54: #{tpu_custom_call.1} parent=51 // pred_check_branch
          %452 = sbr.rel (%p450) target = $region56
        $region55: #{tpu_custom_call.1} parent=51 // pred_region
          %s453 = sand.u32 %s120, 1
          %s454 = scalar_lea.sflag [#allocation4], %s453
          %s455 = sand.u32 %s120, 1
          %s456 = smul.addr %s455, 32
          %s457 = scalar_lea.vmem [#allocation7], %s456
          %458 = dma.done %s454, 512
        $region56: #{tpu_custom_call.1} parent=51 // pred_fallthru
          _
      $region52: #{tpu_custom_call.1} parent=5 // pred_fallthru
        _
    $region6: #{tpu_custom_call.1} parent=1 // loop_footer
      %s21 = sadd.s32 1, %s17
    $region7: #{tpu_custom_call.1} parent=1 // loop_footer_branch
      %16 = sbr.rel target = $region3
    $region8: #{tpu_custom_call.1} parent=1 // loop_exit
      _
    %459 = vsyncpa [#allocation3], 1
    %s460 = scalar_lea.sflag [#allocation3], 1
    %461 = vsyncpa %s460, 1
    %462 = vsyncpa [#allocation6], 1
    %463 = vsyncpa [#allocation4], 1
    %s464 = scalar_lea.sflag [#allocation4], 1
    %465 = vsyncpa %s464, 1

</llo_original>
